<compile_context>
chip_gen: v7x
topology: tpu7x:2x2x1
jax: 0.10.0
libtpu: 0.0.40
codegen_flags: <defaults>
</compile_context>

<pallas_src>
import functools

import numpy as np
import jax
import jax.numpy as jnp
from jax.experimental import pallas as pl
from jax.experimental.pallas import tpu as pltpu


# ------------------------------ Pallas kernel -------------------------------

def _se_block_kernel(x_ref, w1t_ref, b1_ref, w2t_ref, b2_ref, o_ref, *, inv_hw):
    """Fused SE block for one (Bt, C, HW) batch tile.

    x_ref  : (Bt, C, HW)  activations (NCHW, spatial flattened onto lanes)
    w1t_ref: (C, Cr)      fc1 weight, pre-transposed to (in, out)
    b1_ref : (1, Cr)      fc1 bias (row vector)
    w2t_ref: (Cr, C)      fc2 weight, pre-transposed
    b2_ref : (1, C)       fc2 bias
    o_ref  : (Bt, C, HW)  gated output
    """
    # --- squeeze: global average pool over the spatial (lane) axis ----------
    # f32 accumulation regardless of the activation dtype.
    y = jnp.sum(x_ref[...].astype(jnp.float32), axis=2) * inv_hw        # (Bt, C)

    # --- excite: FCs batched across the tile (lane-dense MXU results) -------
    h = jnp.dot(y, w1t_ref[...], preferred_element_type=jnp.float32)
    h = jnp.maximum(h + b1_ref[...], 0.0)                                # (Bt, Cr)
    g = jnp.dot(h, w2t_ref[...], preferred_element_type=jnp.float32)
    g = jax.nn.sigmoid(g + b2_ref[...])                                  # (Bt, C)

    # --- scale: re-read the slab from VMEM, stream load-mul-store -----------
    gate = g.astype(o_ref.dtype)[:, :, None]                             # (Bt, C, 1)
    o_ref[...] = x_ref[...] * gate


# ----------------------------- tiling helpers --------------------------------

def _vmem_capacity_bytes(default=64 << 20):
    """Physical VMEM per core; falls back to the v7x floor (64 MiB)."""
    try:
        info = pltpu.get_tpu_info()
        return int(getattr(info, "vmem_capacity_bytes", default))
    except Exception:
        return default


def _pick_batch_tile(B, C, HW, itemsize, vmem_bytes):
    """Pick Bt (batch elements per grid step)."""
    per_elem = C * HW * itemsize                 # one batch element's slab
    target, floor = 512 * 1024, 256 * 1024       # desired per-step block bytes
    bt = max(1, min(B, -(-target // per_elem)))  # ceil(target / per_elem)
    # VMEM cap: ~2 in + 2 out pipeline buffers of the block must fit.
    budget = int(vmem_bytes * 0.6)
    while bt > 1 and 4 * bt * per_elem > budget:
        bt -= 1
    # Prefer >= 4 grid steps (>= 2 per TensorCore on v7x) while the per-step
    # block stays above the floor, so DMA overlaps compute on each core.
    while bt > 1 and (B // bt) < 4 and (bt - 1) * per_elem >= floor:
        bt -= 1
    while B % bt:                                # keep index maps trivial
        bt -= 1
    return bt


# --------------------------------- wrapper -----------------------------------

def se_block(x, w1, b1, w2, b2):
    """SEBlock forward. x: (B, C, H, W) NCHW; weights in PyTorch layout
    (w1: (C//r, C), w2: (C, C//r)). Returns (B, C, H, W)."""
    B, C, H, W = x.shape
    Cr = w1.shape[0]
    HW = H * W
    itemsize = x.dtype.itemsize

    # Lane-dense layout: keep NCHW, flatten the spatial axis onto lanes
    # (no wrapper transpose -> no extra HBM pass).
    x2 = x.reshape(B, C, HW)

    vmem_cap = _vmem_capacity_bytes()
    Bt = _pick_batch_tile(B, C, HW, itemsize, vmem_cap)

    block_bytes = Bt * C * HW * itemsize
    w_bytes = sum(int(a.size) * a.dtype.itemsize for a in (w1, b1, w2, b2))
    # 2 in + 2 out pipeline buffers of the activation block + weights + margin.
    needed = 4 * block_bytes + 2 * w_bytes + (4 << 20)
    vmem_limit = int(min(0.9 * vmem_cap, max(needed, 32 << 20)))

    out = pl.pallas_call(
        functools.partial(_se_block_kernel, inv_hw=1.0 / HW),
        out_shape=jax.ShapeDtypeStruct((B, C, HW), x.dtype),
        grid=(B // Bt,),
        in_specs=[
            pl.BlockSpec((Bt, C, HW), lambda b: (b, 0, 0)),   # activation tile
            pl.BlockSpec((C, Cr), lambda b: (0, 0)),          # fc1 W^T (fetched once)
            pl.BlockSpec((1, Cr), lambda b: (0, 0)),          # fc1 b
            pl.BlockSpec((Cr, C), lambda b: (0, 0)),          # fc2 W^T
            pl.BlockSpec((1, C), lambda b: (0, 0)),           # fc2 b
        ],
        out_specs=pl.BlockSpec((Bt, C, HW), lambda b: (b, 0, 0)),
        compiler_params=pltpu.CompilerParams(
            dimension_semantics=("parallel",),                # megacore split
            vmem_limit_bytes=vmem_limit,
        ),
    )(x2, w1.T, b1.reshape(1, Cr), w2.T, b2.reshape(1, C))

    return out.reshape(B, C, H, W)


# --------------------------- pure-JAX reference ------------------------------

def se_block_ref(x, w1, b1, w2, b2):
    y = jnp.mean(x, axis=(2, 3))                       # (B, C)
    h = jnp.maximum(y @ w1.T + b1, 0.0)                # (B, Cr)
    g = jax.nn.sigmoid(h @ w2.T + b2)                  # (B, C)
    return x * g[:, :, None, None]


# ------------------------------------ main -----------------------------------

if __name__ == "__main__":
    B, C, H, W = 8, 128, 16, 16          # C=128 lane-friendly; reduction=16 -> Cr=8
    reduction = 16
    Cr = C // reduction

    key = jax.random.PRNGKey(0)
    kx, k1, k2, k3, k4 = jax.random.split(key, 5)

    x = jax.random.normal(kx, (B, C, H, W), jnp.float32)

    # nn.Linear default init: U(-1/sqrt(fan_in), 1/sqrt(fan_in))
    lim1 = 1.0 / np.sqrt(C)
    w1 = jax.random.uniform(k1, (Cr, C), jnp.float32, -lim1, lim1)
    b1 = jax.random.uniform(k2, (Cr,), jnp.float32, -lim1, lim1)
    lim2 = 1.0 / np.sqrt(Cr)
    w2 = jax.random.uniform(k3, (C, Cr), jnp.float32, -lim2, lim2)
    b2 = jax.random.uniform(k4, (C,), jnp.float32, -lim2, lim2)

    fwd = jax.jit(se_block)
    out = jax.block_until_ready(fwd(x, w1, b1, w2, b2))

    assert out.shape == (B, C, H, W), out.shape
    assert bool(jnp.all(jnp.isfinite(out)))

    ref = se_block_ref(x, w1, b1, w2, b2)
    np.testing.assert_allclose(np.asarray(out), np.asarray(ref),
                               rtol=1e-4, atol=1e-5)

    print("KERNEL_OK")
</pallas_src>

<mosaic_0001>
module attributes {stable_mosaic.version = 11 : i64} {
  func.func @_se_block_kernel(%arg0: i32, %arg1: memref<2x128x256xf32, #tpu.memory_space<vmem>>, %arg2: memref<128x8xf32, #tpu.memory_space<vmem>>, %arg3: memref<1x8xf32, #tpu.memory_space<vmem>>, %arg4: memref<8x128xf32, #tpu.memory_space<vmem>>, %arg5: memref<1x128xf32, #tpu.memory_space<vmem>>, %arg6: memref<2x128x256xf32, #tpu.memory_space<vmem>>) attributes {dimension_semantics = [#tpu.dimension_semantics<parallel>], iteration_bounds = array<i64: 4>, scalar_prefetch = 0 : i64, scratch_operands = 0 : i64, tpu.core_type = #tpu.core_type<tc>, window_params = [{transform_indices = @transform_0, window_bounds = array<i64: 2, 128, 256>}, {pipeline_mode = #tpu.pipeline_mode<synchronous>, transform_indices = @transform_1, window_bounds = array<i64: 128, 8>}, {pipeline_mode = #tpu.pipeline_mode<synchronous>, transform_indices = @transform_2, window_bounds = array<i64: 1, 8>}, {pipeline_mode = #tpu.pipeline_mode<synchronous>, transform_indices = @transform_3, window_bounds = array<i64: 8, 128>}, {pipeline_mode = #tpu.pipeline_mode<synchronous>, transform_indices = @transform_4, window_bounds = array<i64: 1, 128>}, {transform_indices = @transform_5, window_bounds = array<i64: 2, 128, 256>}]} {
    %c0 = arith.constant 0 : index
    %c0_0 = arith.constant 0 : index
    %c0_1 = arith.constant 0 : index
    %0 = vector.load %arg1[%c0, %c0_0, %c0_1] : memref<2x128x256xf32, #tpu.memory_space<vmem>>, vector<2x128x256xf32>
    %cst = arith.constant dense<0.000000e+00> : vector<2x128xf32>
    %1 = vector.multi_reduction <add>, %0, %cst [2] : vector<2x128x256xf32> to vector<2x128xf32>
    %cst_2 = arith.constant 3.906250e-03 : f32
    %2 = vector.broadcast %cst_2 : f32 to vector<2x128xf32>
    %3 = arith.mulf %1, %2 : vector<2x128xf32>
    %c0_3 = arith.constant 0 : index
    %c0_4 = arith.constant 0 : index
    %4 = vector.load %arg2[%c0_3, %c0_4] : memref<128x8xf32, #tpu.memory_space<vmem>>, vector<128x8xf32>
    %cst_5 = arith.constant dense<0.000000e+00> : vector<2x8xf32>
    %5 = tpu.matmul %3, %4, %cst_5 {dimension_numbers = #tpu.dot_dimension_numbers<[1], [0], [0], [1], [0, 0, 1, 1], [], []>} : vector<2x128xf32>, vector<128x8xf32>, vector<2x8xf32> -> vector<2x8xf32>
    %c0_6 = arith.constant 0 : index
    %c0_7 = arith.constant 0 : index
    %6 = vector.load %arg3[%c0_6, %c0_7] : memref<1x8xf32, #tpu.memory_space<vmem>>, vector<1x8xf32>
    %7 = vector.broadcast %6 : vector<1x8xf32> to vector<2x8xf32>
    %8 = arith.addf %5, %7 : vector<2x8xf32>
    %cst_8 = arith.constant 0.000000e+00 : f32
    %9 = vector.broadcast %cst_8 : f32 to vector<2x8xf32>
    %10 = arith.maximumf %8, %9 : vector<2x8xf32>
    %c0_9 = arith.constant 0 : index
    %c0_10 = arith.constant 0 : index
    %11 = vector.load %arg4[%c0_9, %c0_10] : memref<8x128xf32, #tpu.memory_space<vmem>>, vector<8x128xf32>
    %cst_11 = arith.constant dense<0.000000e+00> : vector<2x128xf32>
    %12 = tpu.matmul %10, %11, %cst_11 {dimension_numbers = #tpu.dot_dimension_numbers<[1], [0], [0], [1], [0, 0, 1, 1], [], []>} : vector<2x8xf32>, vector<8x128xf32>, vector<2x128xf32> -> vector<2x128xf32>
    %c0_12 = arith.constant 0 : index
    %c0_13 = arith.constant 0 : index
    %13 = vector.load %arg5[%c0_12, %c0_13] : memref<1x128xf32, #tpu.memory_space<vmem>>, vector<1x128xf32>
    %14 = vector.broadcast %13 : vector<1x128xf32> to vector<2x128xf32>
    %15 = arith.addf %12, %14 : vector<2x128xf32>
    %16 = arith.negf %15 : vector<2x128xf32>
    %17 = math.exp %16 : vector<2x128xf32>
    %cst_14 = arith.constant 1.000000e+00 : f32
    %18 = vector.broadcast %cst_14 : f32 to vector<2x128xf32>
    %19 = arith.addf %18, %17 : vector<2x128xf32>
    %20 = arith.divf %18, %19 : vector<2x128xf32>
    %21 = vector.shape_cast %20 : vector<2x128xf32> to vector<2x128x1xf32>
    %c0_15 = arith.constant 0 : index
    %c0_16 = arith.constant 0 : index
    %c0_17 = arith.constant 0 : index
    %22 = vector.load %arg1[%c0_15, %c0_16, %c0_17] : memref<2x128x256xf32, #tpu.memory_space<vmem>>, vector<2x128x256xf32>
    %23 = vector.broadcast %21 : vector<2x128x1xf32> to vector<2x128x256xf32>
    %24 = arith.mulf %22, %23 : vector<2x128x256xf32>
    %c0_18 = arith.constant 0 : index
    %c0_19 = arith.constant 0 : index
    %c0_20 = arith.constant 0 : index
    %25 = vector.load %arg6[%c0_18, %c0_19, %c0_20] : memref<2x128x256xf32, #tpu.memory_space<vmem>>, vector<2x128x256xf32>
    tpu.vector_store %arg6[%c0_18, %c0_19, %c0_20], %24 {strides = array<i32>} : memref<2x128x256xf32, #tpu.memory_space<vmem>>, vector<2x128x256xf32>,
    return
  }
  func.func @transform_0(%arg0: i32) -> (i32, i32, i32) {
    %c0_i32 = arith.constant 0 : i32
    %c0_i32_0 = arith.constant 0 : i32
    %c0_i32_1 = arith.constant 0 : i32
    return %arg0, %c0_i32, %c0_i32_0 : i32, i32, i32
  }
  func.func @transform_1(%arg0: i32) -> (i32, i32) {
    %c0_i32 = arith.constant 0 : i32
    %c0_i32_0 = arith.constant 0 : i32
    %c0_i32_1 = arith.constant 0 : i32
    return %c0_i32, %c0_i32_0 : i32, i32
  }
  func.func @transform_2(%arg0: i32) -> (i32, i32) {
    %c0_i32 = arith.constant 0 : i32
    %c0_i32_0 = arith.constant 0 : i32
    %c0_i32_1 = arith.constant 0 : i32
    return %c0_i32, %c0_i32_0 : i32, i32
  }
  func.func @transform_3(%arg0: i32) -> (i32, i32) {
    %c0_i32 = arith.constant 0 : i32
    %c0_i32_0 = arith.constant 0 : i32
    %c0_i32_1 = arith.constant 0 : i32
    return %c0_i32, %c0_i32_0 : i32, i32
  }
  func.func @transform_4(%arg0: i32) -> (i32, i32) {
    %c0_i32 = arith.constant 0 : i32
    %c0_i32_0 = arith.constant 0 : i32
    %c0_i32_1 = arith.constant 0 : i32
    return %c0_i32, %c0_i32_0 : i32, i32
  }
  func.func @transform_5(%arg0: i32) -> (i32, i32, i32) {
    %c0_i32 = arith.constant 0 : i32
    %c0_i32_0 = arith.constant 0 : i32
    %c0_i32_1 = arith.constant 0 : i32
    return %arg0, %c0_i32, %c0_i32_0 : i32, i32, i32
  }
}

</mosaic_0001>

<llo_original>
// kernel: se_block.1
$region0: #{se_block.1}
  #allocation0 [shape = 'u32[]', space=smem, size = 0x4, offset = 0x4, fixed_abs, tag = 'smem constant byte address 0x4 - core index']
  #allocation1 [shape = 'u32[144,128]{1,0:T(1,128)}', space=vmem, size = 0x12000, scoped, tag = 'internal scratch']
  %s0 = inlined_call_operand.vmem [shape: f32[8,128,256], index: 0, kind: input, shape index: {}]
  %s1 = inlined_call_operand.vmem [shape: f32[128,8], index: 1, kind: input, shape index: {}]
  %s2 = inlined_call_operand.vmem [shape: f32[1,8], index: 2, kind: input, shape index: {}]
  %s3 = inlined_call_operand.vmem [shape: f32[8,128], index: 3, kind: input, shape index: {}]
  %s4 = inlined_call_operand.vmem [shape: f32[1,128], index: 4, kind: input, shape index: {}]
  %s5 = inlined_call_operand.vmem [shape: f32[8,128,256], index: 5, kind: output, shape index: {}]
  %s6 = sld [smem:[#allocation0]]
  $region53: #{se_block.1} parent=0
    _
  %s8 = ssub.s32 1, %s6
  %s9 = scalar_select 0, %s8, %s6
  loop: start=0, step=1, limit=6
  $region2: #{se_block.1} parent=0 // loop_pre_header
    _
  $region3: #{se_block.1} parent=0 // loop_header
    %s11 = sphi 0, %s15
    %p12 = scmp.ge.s32.totalorder %s11, 6
    %s21 = sphi 0, %s23
    %s24 = sphi 0, %s21
    %s25 = sphi 0, %s24
    %s41 = sphi 0, %s25
    %s45 = sphi 0, %s45
    %s47 = sphi 0, %s45
    %s48 = sphi 0, %s47
    %s62 = sphi 0, %s48
    %s66 = sphi 0, %s66
    %s68 = sphi 0, %s66
    %s69 = sphi 0, %s68
    %s83 = sphi 0, %s69
    %s87 = sphi 0, %s87
    %s89 = sphi 0, %s87
    %s90 = sphi 0, %s89
    %s104 = sphi 0, %s90
    %s108 = sphi 0, %s108
    %s110 = sphi 0, %s108
    %s111 = sphi 0, %s110
    %s125 = sphi 0, %s111
    %s131 = sphi 0, %s133
    %s134 = sphi 0, %s131
    %s135 = sphi 0, %s134
    %s151 = sphi 0, %s135
  $region4: #{se_block.1} parent=0 // loop_header_branch
    %14 = sbr.rel (%p12) target = $region8
  $region5: #{se_block.1} parent=0 // loop_body
    %s16 = ssub.s32 %s11, 1
    %s17 = ssub.s32 %s11, 2
    %s18 = sadd.s32 %s11, 1
    %s19 = ssub.s32 %s11, %s18
    %p20 = scmp.eq.s32.totalorder %s19, 0
    %s22 = sadd.s32 %s21, 1
    %s23 = scalar_select %p20, %s21, %s22
    %p26 = pneg %p20
    %p27 = scmp.eq.s32.totalorder %s11, 3
    %p28 = por %p26, %p27
    %p29 = scmp.ne.s32.totalorder %s21, %s24
    %p30 = scmp.eq.s32.totalorder %s11, 0
    %p31 = por %p29, %p30
    %p32 = scmp.ne.s32.totalorder %s21, %s24
    %p33 = scmp.eq.s32.totalorder %s16, 3
    %p34 = por %p32, %p33
    %p35 = scmp.ne.s32.totalorder %s24, %s25
    %p36 = scmp.eq.s32.totalorder %s16, 0
    %p37 = por %p35, %p36
    %p38 = scmp.ne.s32.totalorder %s24, %s25
    %p39 = scmp.eq.s32.totalorder %s17, 3
    %p40 = por %p38, %p39
    %p42 = scmp.ne.s32.totalorder %s25, %s41
    %p43 = scmp.eq.s32.totalorder %s17, 0
    %p44 = por %p42, %p43
    %s46 = sadd.s32 %s45, 1
    %p49 = scmp.eq.s32.totalorder %s11, 3
    %p50 = scmp.ne.s32.totalorder %s45, %s47
    %p51 = scmp.eq.s32.totalorder %s11, 0
    %p52 = por %p50, %p51
    %p53 = scmp.ne.s32.totalorder %s45, %s47
    %p54 = scmp.eq.s32.totalorder %s16, 3
    %p55 = por %p53, %p54
    %p56 = scmp.ne.s32.totalorder %s47, %s48
    %p57 = scmp.eq.s32.totalorder %s16, 0
    %p58 = por %p56, %p57
    %p59 = scmp.ne.s32.totalorder %s47, %s48
    %p60 = scmp.eq.s32.totalorder %s17, 3
    %p61 = por %p59, %p60
    %p63 = scmp.ne.s32.totalorder %s48, %s62
    %p64 = scmp.eq.s32.totalorder %s17, 0
    %p65 = por %p63, %p64
    %s67 = sadd.s32 %s66, 1
    %p70 = scmp.eq.s32.totalorder %s11, 3
    %p71 = scmp.ne.s32.totalorder %s66, %s68
    %p72 = scmp.eq.s32.totalorder %s11, 0
    %p73 = por %p71, %p72
    %p74 = scmp.ne.s32.totalorder %s66, %s68
    %p75 = scmp.eq.s32.totalorder %s16, 3
    %p76 = por %p74, %p75
    %p77 = scmp.ne.s32.totalorder %s68, %s69
    %p78 = scmp.eq.s32.totalorder %s16, 0
    %p79 = por %p77, %p78
    %p80 = scmp.ne.s32.totalorder %s68, %s69
    %p81 = scmp.eq.s32.totalorder %s17, 3
    %p82 = por %p80, %p81
    %p84 = scmp.ne.s32.totalorder %s69, %s83
    %p85 = scmp.eq.s32.totalorder %s17, 0
    %p86 = por %p84, %p85
    %s88 = sadd.s32 %s87, 1
    %p91 = scmp.eq.s32.totalorder %s11, 3
    %p92 = scmp.ne.s32.totalorder %s87, %s89
    %p93 = scmp.eq.s32.totalorder %s11, 0
    %p94 = por %p92, %p93
    %p95 = scmp.ne.s32.totalorder %s87, %s89
    %p96 = scmp.eq.s32.totalorder %s16, 3
    %p97 = por %p95, %p96
    %p98 = scmp.ne.s32.totalorder %s89, %s90
    %p99 = scmp.eq.s32.totalorder %s16, 0
    %p100 = por %p98, %p99
    %p101 = scmp.ne.s32.totalorder %s89, %s90
    %p102 = scmp.eq.s32.totalorder %s17, 3
    %p103 = por %p101, %p102
    %p105 = scmp.ne.s32.totalorder %s90, %s104
    %p106 = scmp.eq.s32.totalorder %s17, 0
    %p107 = por %p105, %p106
    %s109 = sadd.s32 %s108, 1
    %p112 = scmp.eq.s32.totalorder %s11, 3
    %p113 = scmp.ne.s32.totalorder %s108, %s110
    %p114 = scmp.eq.s32.totalorder %s11, 0
    %p115 = por %p113, %p114
    %p116 = scmp.ne.s32.totalorder %s108, %s110
    %p117 = scmp.eq.s32.totalorder %s16, 3
    %p118 = por %p116, %p117
    %p119 = scmp.ne.s32.totalorder %s110, %s111
    %p120 = scmp.eq.s32.totalorder %s16, 0
    %p121 = por %p119, %p120
    %p122 = scmp.ne.s32.totalorder %s110, %s111
    %p123 = scmp.eq.s32.totalorder %s17, 3
    %p124 = por %p122, %p123
    %p126 = scmp.ne.s32.totalorder %s111, %s125
    %p127 = scmp.eq.s32.totalorder %s17, 0
    %p128 = por %p126, %p127
    %s129 = ssub.s32 %s11, %s18
    %p130 = scmp.eq.s32.totalorder %s129, 0
    %s132 = sadd.s32 %s131, 1
    %s133 = scalar_select %p130, %s131, %s132
    %p136 = pneg %p130
    %p137 = scmp.eq.s32.totalorder %s11, 3
    %p138 = por %p136, %p137
    %p139 = scmp.ne.s32.totalorder %s131, %s134
    %p140 = scmp.eq.s32.totalorder %s11, 0
    %p141 = por %p139, %p140
    %p142 = scmp.ne.s32.totalorder %s131, %s134
    %p143 = scmp.eq.s32.totalorder %s16, 3
    %p144 = por %p142, %p143
    %p145 = scmp.ne.s32.totalorder %s134, %s135
    %p146 = scmp.eq.s32.totalorder %s16, 0
    %p147 = por %p145, %p146
    %p148 = scmp.ne.s32.totalorder %s134, %s135
    %p149 = scmp.eq.s32.totalorder %s17, 3
    %p150 = por %p148, %p149
    %p152 = scmp.ne.s32.totalorder %s135, %s151
    %p153 = scmp.eq.s32.totalorder %s17, 0
    %p154 = por %p152, %p153
    %p155 = scmp.le.s32.totalorder 1, %s11
    %p156 = scmp.lt.s32.totalorder %s11, 5
    %p157 = pnand %p155, %p156
    %p158 = pneg %p157
    // Predicated region
    $region9: #{se_block.1} parent=5 // pred_check
      _
    $region10: #{se_block.1} parent=5 // pred_check_branch
      %160 = sbr.rel (%p157) target = $region12
    $region11: #{se_block.1} parent=5 // pred_region
      %s161 = ssub.s32 %s11, 1
      // Predicated region
      $region13: #{se_block.1} parent=11 // pred_check
        %p162 = pneg %p58
      $region14: #{se_block.1} parent=11 // pred_check_branch
        %164 = sbr.rel (%p162) target = $region16
      $region15: #{se_block.1} parent=11 // pred_region
        _
      $region16: #{se_block.1} parent=11 // pred_fallthru
        _
      // Predicated region
      $region17: #{se_block.1} parent=11 // pred_check
        %p165 = pneg %p79
      $region18: #{se_block.1} parent=11 // pred_check_branch
        %167 = sbr.rel (%p165) target = $region20
      $region19: #{se_block.1} parent=11 // pred_region
        _
      $region20: #{se_block.1} parent=11 // pred_fallthru
        _
      // Predicated region
      $region21: #{se_block.1} parent=11 // pred_check
        %p168 = pneg %p100
      $region22: #{se_block.1} parent=11 // pred_check_branch
        %170 = sbr.rel (%p168) target = $region24
      $region23: #{se_block.1} parent=11 // pred_region
        _
      $region24: #{se_block.1} parent=11 // pred_fallthru
        _
      // Predicated region
      $region25: #{se_block.1} parent=11 // pred_check
        %p171 = pneg %p121
      $region26: #{se_block.1} parent=11 // pred_check_branch
        %173 = sbr.rel (%p171) target = $region28
      $region27: #{se_block.1} parent=11 // pred_region
        _
      $region28: #{se_block.1} parent=11 // pred_fallthru
        _
    $region12: #{se_block.1} parent=5 // pred_fallthru
      _
    %p174 = scmp.lt.s32.totalorder %s11, 4
    // Predicated region
    $region29: #{se_block.1} parent=5 // pred_check
      %p175 = pneg %p174
    $region30: #{se_block.1} parent=5 // pred_check_branch
      %177 = sbr.rel (%p175) target = $region32
    $region31: #{se_block.1} parent=5 // pred_region
      // Predicated region
      $region33: #{se_block.1} parent=31 // pred_check
        %p178 = pneg %p31
      $region34: #{se_block.1} parent=31 // pred_check_branch
        %180 = sbr.rel (%p178) target = $region36
      $region35: #{se_block.1} parent=31 // pred_region
        %s181 = smul.u32 2, %s11
        %p182 = scmp.lt.s32.totalorder %s181, 7
        %s183 = scalar_select %p182, %s181, 7
        %s184 = smul.addr %s183, 32
        %s185 = smul.addr %s184, 8
        %s186 = scalar_lea.vmem %s0, %s185
        %s187 = smul.u32 2, %s11
      $region36: #{se_block.1} parent=31 // pred_fallthru
        _
    $region32: #{se_block.1} parent=5 // pred_fallthru
      _
    %p188 = scmp.le.s32.totalorder 1, %s11
    %p189 = scmp.lt.s32.totalorder %s11, 5
    %p190 = pnand %p188, %p189
    %p191 = pneg %p190
    // Predicated region
    $region37: #{se_block.1} parent=5 // pred_check
      _
    $region38: #{se_block.1} parent=5 // pred_check_branch
      %193 = sbr.rel (%p190) target = $region40
    $region39: #{se_block.1} parent=5 // pred_region
      %s194 = ssub.s32 %s11, 1
      %s195 = smul.u32 2, %s16
      %p196 = scmp.lt.s32.totalorder %s195, 7
      %s197 = scalar_select %p196, %s195, 7
      %s198 = smul.addr %s197, 32
      %s199 = smul.addr %s198, 8
      %s200 = scalar_lea.vmem %s0, %s199
      %p201 = pneg %p37
      %p202 = pneg %p34
      %p203 = pneg %p58
      %p204 = pneg %p55
      %p205 = pneg %p79
      %p206 = pneg %p76
      %p207 = pneg %p100
      %p208 = pneg %p97
      %p209 = pneg %p121
      %p210 = pneg %p118
      %p211 = pneg %p147
      %p212 = pneg %p144
      %s213 = smul.u32 2, %s16
      %p214 = scmp.lt.s32.totalorder %s213, 7
      %s215 = scalar_select %p214, %s213, 7
      %s216 = smul.addr %s215, 32
      %s217 = smul.addr %s216, 8
      %s218 = scalar_lea.vmem %s5, %s217
      %s219 = smul.u32 2, %s16
      %p220 = scmp.lt.s32.totalorder %s219, 7
      %s221 = scalar_select %p220, %s219, 7
      %s222 = smul.addr %s221, 32
      %s223 = smul.addr %s222, 8
      %s224 = scalar_lea.vmem %s0, %s223
      %s225 = smul.u32 2, %s16
      %s226 = smul.u32 2, %s16
      %p227 = scmp.lt.s32.totalorder %s226, 7
      %s228 = scalar_select %p227, %s226, 7
      %s229 = smul.addr %s228, 32
      %s230 = smul.addr %s229, 8
      %s231 = scalar_lea.vmem %s5, %s230
      %s232 = smul.u32 2, %s16
      %v233 = vld [vmem:[%s224] sm:$0xff]
      %v234 = vld [vmem:[%s224 + $0x8] sm:$0xff]
      %v235 = vld [vmem:[%s224 + $0x10] sm:$0xff]
      %v236 = vld [vmem:[%s224 + $0x18] sm:$0xff]
      %v237 = vld [vmem:[%s224 + $0x20] sm:$0xff]
      %v238 = vld [vmem:[%s224 + $0x28] sm:$0xff]
      %v239 = vld [vmem:[%s224 + $0x30] sm:$0xff]
      %v240 = vld [vmem:[%s224 + $0x38] sm:$0xff]
      %v241 = vld [vmem:[%s224 + $0x40] sm:$0xff]
      %v242 = vld [vmem:[%s224 + $0x48] sm:$0xff]
      %v243 = vld [vmem:[%s224 + $0x50] sm:$0xff]
      %v244 = vld [vmem:[%s224 + $0x58] sm:$0xff]
      %v245 = vld [vmem:[%s224 + $0x60] sm:$0xff]
      %v246 = vld [vmem:[%s224 + $0x68] sm:$0xff]
      %v247 = vld [vmem:[%s224 + $0x70] sm:$0xff]
      %v248 = vld [vmem:[%s224 + $0x78] sm:$0xff]
      %v249 = vld [vmem:[%s224 + $0x80] sm:$0xff]
      %v250 = vld [vmem:[%s224 + $0x88] sm:$0xff]
      %v251 = vld [vmem:[%s224 + $0x90] sm:$0xff]
      %v252 = vld [vmem:[%s224 + $0x98] sm:$0xff]
      %v253 = vld [vmem:[%s224 + $0xa0] sm:$0xff]
      %v254 = vld [vmem:[%s224 + $0xa8] sm:$0xff]
      %v255 = vld [vmem:[%s224 + $0xb0] sm:$0xff]
      %v256 = vld [vmem:[%s224 + $0xb8] sm:$0xff]
      %v257 = vld [vmem:[%s224 + $0xc0] sm:$0xff]
      %v258 = vld [vmem:[%s224 + $0xc8] sm:$0xff]
      %v259 = vld [vmem:[%s224 + $0xd0] sm:$0xff]
      %v260 = vld [vmem:[%s224 + $0xd8] sm:$0xff]
      %v261 = vld [vmem:[%s224 + $0xe0] sm:$0xff]
      %v262 = vld [vmem:[%s224 + $0xe8] sm:$0xff]
      %v263 = vld [vmem:[%s224 + $0xf0] sm:$0xff]
      %v264 = vld [vmem:[%s224 + $0xf8] sm:$0xff]
      %v265 = vld [vmem:[%s224 + $0x100] sm:$0xff]
      %v266 = vld [vmem:[%s224 + $0x108] sm:$0xff]
      %v267 = vld [vmem:[%s224 + $0x110] sm:$0xff]
      %v268 = vld [vmem:[%s224 + $0x118] sm:$0xff]
      %v269 = vld [vmem:[%s224 + $0x120] sm:$0xff]
      %v270 = vld [vmem:[%s224 + $0x128] sm:$0xff]
      %v271 = vld [vmem:[%s224 + $0x130] sm:$0xff]
      %v272 = vld [vmem:[%s224 + $0x138] sm:$0xff]
      %v273 = vld [vmem:[%s224 + $0x140] sm:$0xff]
      %v274 = vld [vmem:[%s224 + $0x148] sm:$0xff]
      %v275 = vld [vmem:[%s224 + $0x150] sm:$0xff]
      %v276 = vld [vmem:[%s224 + $0x158] sm:$0xff]
      %v277 = vld [vmem:[%s224 + $0x160] sm:$0xff]
      %v278 = vld [vmem:[%s224 + $0x168] sm:$0xff]
      %v279 = vld [vmem:[%s224 + $0x170] sm:$0xff]
      %v280 = vld [vmem:[%s224 + $0x178] sm:$0xff]
      %v281 = vld [vmem:[%s224 + $0x180] sm:$0xff]
      %v282 = vld [vmem:[%s224 + $0x188] sm:$0xff]
      %v283 = vld [vmem:[%s224 + $0x190] sm:$0xff]
      %v284 = vld [vmem:[%s224 + $0x198] sm:$0xff]
      %v285 = vld [vmem:[%s224 + $0x1a0] sm:$0xff]
      %v286 = vld [vmem:[%s224 + $0x1a8] sm:$0xff]
      %v287 = vld [vmem:[%s224 + $0x1b0] sm:$0xff]
      %v288 = vld [vmem:[%s224 + $0x1b8] sm:$0xff]
      %v289 = vld [vmem:[%s224 + $0x1c0] sm:$0xff]
      %v290 = vld [vmem:[%s224 + $0x1c8] sm:$0xff]
      %v291 = vld [vmem:[%s224 + $0x1d0] sm:$0xff]
      %v292 = vld [vmem:[%s224 + $0x1d8] sm:$0xff]
      %v293 = vld [vmem:[%s224 + $0x1e0] sm:$0xff]
      %v294 = vld [vmem:[%s224 + $0x1e8] sm:$0xff]
      %v295 = vld [vmem:[%s224 + $0x1f0] sm:$0xff]
      %v296 = vld [vmem:[%s224 + $0x1f8] sm:$0xff]
      %v297 = vadd.f32 %v233, %v234
      %298 = vadd.xlane.f32.xlu0 %v297
      %v299 = vpop.xlane.xlu0 %298
      %v300 = vadd.f32 %v235, %v236
      %301 = vadd.xlane.f32.xlu0 %v300
      %v302 = vpop.xlane.xlu0 %301
      %v303 = vadd.f32 %v237, %v238
      %304 = vadd.xlane.f32.xlu0 %v303
      %v305 = vpop.xlane.xlu0 %304
      %v306 = vadd.f32 %v239, %v240
      %307 = vadd.xlane.f32.xlu0 %v306
      %v308 = vpop.xlane.xlu0 %307
      %v309 = vadd.f32 %v241, %v242
      %310 = vadd.xlane.f32.xlu0 %v309
      %v311 = vpop.xlane.xlu0 %310
      %v312 = vadd.f32 %v243, %v244
      %313 = vadd.xlane.f32.xlu0 %v312
      %v314 = vpop.xlane.xlu0 %313
      %v315 = vadd.f32 %v245, %v246
      %316 = vadd.xlane.f32.xlu0 %v315
      %v317 = vpop.xlane.xlu0 %316
      %v318 = vadd.f32 %v247, %v248
      %319 = vadd.xlane.f32.xlu0 %v318
      %v320 = vpop.xlane.xlu0 %319
      %v321 = vadd.f32 %v249, %v250
      %322 = vadd.xlane.f32.xlu0 %v321
      %v323 = vpop.xlane.xlu0 %322
      %v324 = vadd.f32 %v251, %v252
      %325 = vadd.xlane.f32.xlu0 %v324
      %v326 = vpop.xlane.xlu0 %325
      %v327 = vadd.f32 %v253, %v254
      %328 = vadd.xlane.f32.xlu0 %v327
      %v329 = vpop.xlane.xlu0 %328
      %v330 = vadd.f32 %v255, %v256
      %331 = vadd.xlane.f32.xlu0 %v330
      %v332 = vpop.xlane.xlu0 %331
      %v333 = vadd.f32 %v257, %v258
      %334 = vadd.xlane.f32.xlu0 %v333
      %v335 = vpop.xlane.xlu0 %334
      %v336 = vadd.f32 %v259, %v260
      %337 = vadd.xlane.f32.xlu0 %v336
      %v338 = vpop.xlane.xlu0 %337
      %v339 = vadd.f32 %v261, %v262
      %340 = vadd.xlane.f32.xlu0 %v339
      %v341 = vpop.xlane.xlu0 %340
      %v342 = vadd.f32 %v263, %v264
      %343 = vadd.xlane.f32.xlu0 %v342
      %v344 = vpop.xlane.xlu0 %343
      %v345 = vadd.f32 %v265, %v266
      %346 = vadd.xlane.f32.xlu0 %v345
      %v347 = vpop.xlane.xlu0 %346
      %v348 = vadd.f32 %v267, %v268
      %349 = vadd.xlane.f32.xlu0 %v348
      %v350 = vpop.xlane.xlu0 %349
      %v351 = vadd.f32 %v269, %v270
      %352 = vadd.xlane.f32.xlu0 %v351
      %v353 = vpop.xlane.xlu0 %352
      %v354 = vadd.f32 %v271, %v272
      %355 = vadd.xlane.f32.xlu0 %v354
      %v356 = vpop.xlane.xlu0 %355
      %v357 = vadd.f32 %v273, %v274
      %358 = vadd.xlane.f32.xlu0 %v357
      %v359 = vpop.xlane.xlu0 %358
      %v360 = vadd.f32 %v275, %v276
      %361 = vadd.xlane.f32.xlu0 %v360
      %v362 = vpop.xlane.xlu0 %361
      %v363 = vadd.f32 %v277, %v278
      %364 = vadd.xlane.f32.xlu0 %v363
      %v365 = vpop.xlane.xlu0 %364
      %v366 = vadd.f32 %v279, %v280
      %367 = vadd.xlane.f32.xlu0 %v366
      %v368 = vpop.xlane.xlu0 %367
      %v369 = vadd.f32 %v281, %v282
      %370 = vadd.xlane.f32.xlu0 %v369
      %v371 = vpop.xlane.xlu0 %370
      %v372 = vadd.f32 %v283, %v284
      %373 = vadd.xlane.f32.xlu0 %v372
      %v374 = vpop.xlane.xlu0 %373
      %v375 = vadd.f32 %v285, %v286
      %376 = vadd.xlane.f32.xlu0 %v375
      %v377 = vpop.xlane.xlu0 %376
      %v378 = vadd.f32 %v287, %v288
      %379 = vadd.xlane.f32.xlu0 %v378
      %v380 = vpop.xlane.xlu0 %379
      %v381 = vadd.f32 %v289, %v290
      %382 = vadd.xlane.f32.xlu0 %v381
      %v383 = vpop.xlane.xlu0 %382
      %v384 = vadd.f32 %v291, %v292
      %385 = vadd.xlane.f32.xlu0 %v384
      %v386 = vpop.xlane.xlu0 %385
      %v387 = vadd.f32 %v293, %v294
      %388 = vadd.xlane.f32.xlu0 %v387
      %v389 = vpop.xlane.xlu0 %388
      %v390 = vadd.f32 %v295, %v296
      %391 = vadd.xlane.f32.xlu0 %v390
      %v392 = vpop.xlane.xlu0 %391
      %v393 = vmul.f32 %v299, 0.00390625
      %v394 = vmul.f32 %v302, 0.00390625
      %v395 = vmul.f32 %v305, 0.00390625
      %v396 = vmul.f32 %v308, 0.00390625
      %v397 = vmul.f32 %v311, 0.00390625
      %v398 = vmul.f32 %v314, 0.00390625
      %v399 = vmul.f32 %v317, 0.00390625
      %v400 = vmul.f32 %v320, 0.00390625
      %v401 = vmul.f32 %v323, 0.00390625
      %v402 = vmul.f32 %v326, 0.00390625
      %v403 = vmul.f32 %v329, 0.00390625
      %v404 = vmul.f32 %v332, 0.00390625
      %v405 = vmul.f32 %v335, 0.00390625
      %v406 = vmul.f32 %v338, 0.00390625
      %v407 = vmul.f32 %v341, 0.00390625
      %v408 = vmul.f32 %v344, 0.00390625
      %v409 = vmul.f32 %v347, 0.00390625
      %v410 = vmul.f32 %v350, 0.00390625
      %v411 = vmul.f32 %v353, 0.00390625
      %v412 = vmul.f32 %v356, 0.00390625
      %v413 = vmul.f32 %v359, 0.00390625
      %v414 = vmul.f32 %v362, 0.00390625
      %v415 = vmul.f32 %v365, 0.00390625
      %v416 = vmul.f32 %v368, 0.00390625
      %v417 = vmul.f32 %v371, 0.00390625
      %v418 = vmul.f32 %v374, 0.00390625
      %v419 = vmul.f32 %v377, 0.00390625
      %v420 = vmul.f32 %v380, 0.00390625
      %v421 = vmul.f32 %v383, 0.00390625
      %v422 = vmul.f32 %v386, 0.00390625
      %v423 = vmul.f32 %v389, 0.00390625
      %v424 = vmul.f32 %v392, 0.00390625
      %v425 = vld [vmem:[%s1] sm:$0xff]
      %v426 = vld [vmem:[%s1 + $0x8] sm:$0xff]
      %v427 = vld [vmem:[%s1 + $0x10] sm:$0xff]
      %v428 = vld [vmem:[%s1 + $0x18] sm:$0xff]
      %v429 = vld [vmem:[%s1 + $0x20] sm:$0xff]
      %v430 = vld [vmem:[%s1 + $0x28] sm:$0xff]
      %v431 = vld [vmem:[%s1 + $0x30] sm:$0xff]
      %v432 = vld [vmem:[%s1 + $0x38] sm:$0xff]
      %v433 = vld [vmem:[%s1 + $0x40] sm:$0xff]
      %v434 = vld [vmem:[%s1 + $0x48] sm:$0xff]
      %v435 = vld [vmem:[%s1 + $0x50] sm:$0xff]
      %v436 = vld [vmem:[%s1 + $0x58] sm:$0xff]
      %v437 = vld [vmem:[%s1 + $0x60] sm:$0xff]
      %v438 = vld [vmem:[%s1 + $0x68] sm:$0xff]
      %v439 = vld [vmem:[%s1 + $0x70] sm:$0xff]
      %v440 = vld [vmem:[%s1 + $0x78] sm:$0xff]
      %v441 = vld [vmem:[%s2] sm:$0x1]
      %v443 = vlaneseq
      %v444 = vshrl.u32 %v443, 7
      %v445 = vsub.s32 0, %v444
      %v446 = vrot.slane %v441, %v445
      %v480 = vlaneseq
      %v481 = vand.u32 %v480, 127
      %v482 = vlaneseq
      %v483 = vshrl.u32 %v482, 7
      %v484 = vsub.s32 %v481, %v483
      %v485 = vrot.slane %v393, %v484
      %v486 = vadd.s32 %v481, 4294967288
      %v487 = vlaneseq
      %v488 = vshrl.u32 %v487, 7
      %v489 = vsub.s32 %v486, %v488
      %v490 = vrot.slane %v394, %v489
      %vm491 = vcmask 130112
      %v492 = vsel %vm491, %v490, %v485
      %v493 = vadd.s32 %v481, 4294967280
      %v494 = vlaneseq
      %v495 = vshrl.u32 %v494, 7
      %v496 = vsub.s32 %v493, %v495
      %v497 = vrot.slane %v395, %v496
      %vm498 = vcmask 195712
      %v499 = vsel %vm498, %v497, %v492
      %v500 = vadd.s32 %v481, 4294967272
      %v501 = vlaneseq
      %v502 = vshrl.u32 %v501, 7
      %v503 = vsub.s32 %v500, %v502
      %v504 = vrot.slane %v396, %v503
      %vm505 = vcmask 261312
      %v506 = vsel %vm505, %v504, %v499
      %v507 = vadd.s32 %v481, 4294967264
      %v508 = vlaneseq
      %v509 = vshrl.u32 %v508, 7
      %v510 = vsub.s32 %v507, %v509
      %v511 = vrot.slane %v397, %v510
      %vm512 = vcmask 326912
      %v513 = vsel %vm512, %v511, %v506
      %v514 = vadd.s32 %v481, 4294967256
      %v515 = vlaneseq
      %v516 = vshrl.u32 %v515, 7
      %v517 = vsub.s32 %v514, %v516
      %v518 = vrot.slane %v398, %v517
      %vm519 = vcmask 392512
      %v520 = vsel %vm519, %v518, %v513
      %v521 = vadd.s32 %v481, 4294967248
      %v522 = vlaneseq
      %v523 = vshrl.u32 %v522, 7
      %v524 = vsub.s32 %v521, %v523
      %v525 = vrot.slane %v399, %v524
      %vm526 = vcmask 458112
      %v527 = vsel %vm526, %v525, %v520
      %v528 = vadd.s32 %v481, 4294967240
      %v529 = vlaneseq
      %v530 = vshrl.u32 %v529, 7
      %v531 = vsub.s32 %v528, %v530
      %v532 = vrot.slane %v400, %v531
      %vm533 = vcmask 523712
      %v534 = vsel %vm533, %v532, %v527
      %v535 = vadd.s32 %v481, 4294967232
      %v536 = vlaneseq
      %v537 = vshrl.u32 %v536, 7
      %v538 = vsub.s32 %v535, %v537
      %v539 = vrot.slane %v401, %v538
      %vm540 = vcmask 589312
      %v541 = vsel %vm540, %v539, %v534
      %v542 = vadd.s32 %v481, 4294967224
      %v543 = vlaneseq
      %v544 = vshrl.u32 %v543, 7
      %v545 = vsub.s32 %v542, %v544
      %v546 = vrot.slane %v402, %v545
      %vm547 = vcmask 654912
      %v548 = vsel %vm547, %v546, %v541
      %v549 = vadd.s32 %v481, 4294967216
      %v550 = vlaneseq
      %v551 = vshrl.u32 %v550, 7
      %v552 = vsub.s32 %v549, %v551
      %v553 = vrot.slane %v403, %v552
      %vm554 = vcmask 720512
      %v555 = vsel %vm554, %v553, %v548
      %v556 = vadd.s32 %v481, 4294967208
      %v557 = vlaneseq
      %v558 = vshrl.u32 %v557, 7
      %v559 = vsub.s32 %v556, %v558
      %v560 = vrot.slane %v404, %v559
      %vm561 = vcmask 786112
      %v562 = vsel %vm561, %v560, %v555
      %v563 = vadd.s32 %v481, 4294967200
      %v564 = vlaneseq
      %v565 = vshrl.u32 %v564, 7
      %v566 = vsub.s32 %v563, %v565
      %v567 = vrot.slane %v405, %v566
      %vm568 = vcmask 851712
      %v569 = vsel %vm568, %v567, %v562
      %v570 = vadd.s32 %v481, 4294967192
      %v571 = vlaneseq
      %v572 = vshrl.u32 %v571, 7
      %v573 = vsub.s32 %v570, %v572
      %v574 = vrot.slane %v406, %v573
      %vm575 = vcmask 917312
      %v576 = vsel %vm575, %v574, %v569
      %v577 = vadd.s32 %v481, 4294967184
      %v578 = vlaneseq
      %v579 = vshrl.u32 %v578, 7
      %v580 = vsub.s32 %v577, %v579
      %v581 = vrot.slane %v407, %v580
      %vm582 = vcmask 982912
      %v583 = vsel %vm582, %v581, %v576
      %v584 = vadd.s32 %v481, 4294967176
      %v585 = vlaneseq
      %v586 = vshrl.u32 %v585, 7
      %v587 = vsub.s32 %v584, %v586
      %v588 = vrot.slane %v408, %v587
      %vm589 = vcmask 1048512
      %v590 = vsel %vm589, %v588, %v583
      %v591 = vlaneseq
      %v592 = vshrl.u32 %v591, 7
      %v593 = vsub.s32 %v481, %v592
      %v594 = vrot.slane %v409, %v593
      %v595 = vlaneseq
      %v596 = vshrl.u32 %v595, 7
      %v597 = vsub.s32 %v486, %v596
      %v598 = vrot.slane %v410, %v597
      %v599 = vsel %vm491, %v598, %v594
      %v600 = vlaneseq
      %v601 = vshrl.u32 %v600, 7
      %v602 = vsub.s32 %v493, %v601
      %v603 = vrot.slane %v411, %v602
      %v604 = vsel %vm498, %v603, %v599
      %v605 = vlaneseq
      %v606 = vshrl.u32 %v605, 7
      %v607 = vsub.s32 %v500, %v606
      %v608 = vrot.slane %v412, %v607
      %v609 = vsel %vm505, %v608, %v604
      %v610 = vlaneseq
      %v611 = vshrl.u32 %v610, 7
      %v612 = vsub.s32 %v507, %v611
      %v613 = vrot.slane %v413, %v612
      %v614 = vsel %vm512, %v613, %v609
      %v615 = vlaneseq
      %v616 = vshrl.u32 %v615, 7
      %v617 = vsub.s32 %v514, %v616
      %v618 = vrot.slane %v414, %v617
      %v619 = vsel %vm519, %v618, %v614
      %v620 = vlaneseq
      %v621 = vshrl.u32 %v620, 7
      %v622 = vsub.s32 %v521, %v621
      %v623 = vrot.slane %v415, %v622
      %v624 = vsel %vm526, %v623, %v619
      %v625 = vlaneseq
      %v626 = vshrl.u32 %v625, 7
      %v627 = vsub.s32 %v528, %v626
      %v628 = vrot.slane %v416, %v627
      %v629 = vsel %vm533, %v628, %v624
      %v630 = vlaneseq
      %v631 = vshrl.u32 %v630, 7
      %v632 = vsub.s32 %v535, %v631
      %v633 = vrot.slane %v417, %v632
      %v634 = vsel %vm540, %v633, %v629
      %v635 = vlaneseq
      %v636 = vshrl.u32 %v635, 7
      %v637 = vsub.s32 %v542, %v636
      %v638 = vrot.slane %v418, %v637
      %v639 = vsel %vm547, %v638, %v634
      %v640 = vlaneseq
      %v641 = vshrl.u32 %v640, 7
      %v642 = vsub.s32 %v549, %v641
      %v643 = vrot.slane %v419, %v642
      %v644 = vsel %vm554, %v643, %v639
      %v645 = vlaneseq
      %v646 = vshrl.u32 %v645, 7
      %v647 = vsub.s32 %v556, %v646
      %v648 = vrot.slane %v420, %v647
      %v649 = vsel %vm561, %v648, %v644
      %v650 = vlaneseq
      %v651 = vshrl.u32 %v650, 7
      %v652 = vsub.s32 %v563, %v651
      %v653 = vrot.slane %v421, %v652
      %v654 = vsel %vm568, %v653, %v649
      %v655 = vlaneseq
      %v656 = vshrl.u32 %v655, 7
      %v657 = vsub.s32 %v570, %v656
      %v658 = vrot.slane %v422, %v657
      %v659 = vsel %vm575, %v658, %v654
      %v660 = vlaneseq
      %v661 = vshrl.u32 %v660, 7
      %v662 = vsub.s32 %v577, %v661
      %v663 = vrot.slane %v423, %v662
      %v664 = vsel %vm582, %v663, %v659
      %v665 = vlaneseq
      %v666 = vshrl.u32 %v665, 7
      %v667 = vsub.s32 %v584, %v666
      %v668 = vrot.slane %v424, %v667
      %v669 = vsel %vm589, %v668, %v664
      %vm670 = vcmask 1041409
      %v671 = vsel %vm670, %v669, %v590
      %673 = vmatprep.subr.mxu0 0.0
      %674 = vmatpush1.msra.mxu0 %v425
      %675 = vmatprep.subr.mxu0 0.0
      %676 = vmatpush1.msra.mxu0 %v426
      %677 = vmatprep.subr.mxu0 0.0
      %678 = vmatpush1.msra.mxu0 %v427
      %679 = vmatprep.subr.mxu0 0.0
      %680 = vmatpush1.msra.mxu0 %v428
      %681 = vmatprep.subr.mxu0 0.0
      %682 = vmatpush1.msra.mxu0 %v429
      %683 = vmatprep.subr.mxu0 0.0
      %684 = vmatpush1.msra.mxu0 %v430
      %685 = vmatprep.subr.mxu0 0.0
      %686 = vmatpush1.msra.mxu0 %v431
      %687 = vmatprep.subr.mxu0 0.0
      %688 = vmatpush1.msra.mxu0 %v432
      %689 = vmatprep.subr.mxu0 0.0
      %690 = vmatpush1.msra.mxu0 %v433
      %691 = vmatprep.subr.mxu0 0.0
      %692 = vmatpush1.msra.mxu0 %v434
      %693 = vmatprep.subr.mxu0 0.0
      %694 = vmatpush1.msra.mxu0 %v435
      %695 = vmatprep.subr.mxu0 0.0
      %696 = vmatpush1.msra.mxu0 %v436
      %697 = vmatprep.subr.mxu0 0.0
      %698 = vmatpush1.msra.mxu0 %v437
      %699 = vmatprep.subr.mxu0 0.0
      %700 = vmatpush1.msra.mxu0 %v438
      %701 = vmatprep.subr.mxu0 0.0
      %702 = vmatpush1.msra.mxu0 %v439
      %703 = vmatprep.subr.mxu0 0.0
      %704 = vmatpush1.msra.mxu0 %v440
      %705 = vmatprep.subr.mxu0 0.0
      %706 = vmatpush1.msra.mxu0 0.0
      %707 = vmatprep.subr.mxu0 0.0
      %708 = vmatpush1.msra.mxu0 0.0
      %709 = vmatprep.subr.mxu0 0.0
      %710 = vmatpush1.msra.mxu0 0.0
      %711 = vmatprep.subr.mxu0 0.0
      %712 = vmatpush1.msra.mxu0 0.0
      %713 = vmatprep.subr.mxu0 0.0
      %714 = vmatpush1.msra.mxu0 0.0
      %715 = vmatprep.subr.mxu0 0.0
      %716 = vmatpush1.msra.mxu0 0.0
      %717 = vmatprep.subr.mxu0 0.0
      %718 = vmatpush1.msra.mxu0 0.0
      %719 = vmatprep.subr.mxu0 0.0
      %720 = vmatpush1.msra.mxu0 0.0
      %721 = vmatprep.subr.mxu0 0.0
      %722 = vmatpush1.msra.mxu0 0.0
      %723 = vmatprep.subr.mxu0 0.0
      %724 = vmatpush1.msra.mxu0 0.0
      %725 = vmatprep.subr.mxu0 0.0
      %726 = vmatpush1.msra.mxu0 0.0
      %727 = vmatprep.subr.mxu0 0.0
      %728 = vmatpush1.msra.mxu0 0.0
      %729 = vmatprep.subr.mxu0 0.0
      %730 = vmatpush1.msra.mxu0 0.0
      %731 = vmatprep.subr.mxu0 0.0
      %732 = vmatpush1.msra.mxu0 0.0
      %733 = vmatprep.subr.mxu0 0.0
      %734 = vmatpush1.msra.mxu0 0.0
      %735 = vmatprep.subr.mxu0 0.0
      %736 = vmatpush1.msra.mxu0 0.0
      %737 = vmatprep.mubr.f32.mxu0 0.0
      %738 = vmatmul.mubr.f32.gmra.mrb[0].mxu0 %v671
      %v739 = vpop.f32.mrb[0].mxu0
      %v740 = vadd.f32 %v446, %v739
      %v741 = vpop.f32.mrb[0].mxu0
      %742 = vdwg.mxu0
      %v743 = vmax.f32 %v740, 0.0
      %v744 = vld [vmem:[%s3] sm:$0xff]
      %v745 = vld [vmem:[%s4] sm:$0x1]
      %v747 = vlaneseq
      %v748 = vshrl.u32 %v747, 7
      %v749 = vsub.s32 0, %v748
      %v750 = vrot.slane %v745, %v749
      %vm752 = vcmask 64512
      %v754 = vsel %vm752, %v743, 0
      %756 = vmatprep.subr.mxu0 0.0
      %757 = vmatpush1.msra.mxu0 %v744
      %758 = vmatprep.subr.mxu0 0.0
      %759 = vmatpush1.msra.mxu0 0.0
      %760 = vmatprep.subr.mxu0 0.0
      %761 = vmatpush1.msra.mxu0 0.0
      %762 = vmatprep.subr.mxu0 0.0
      %763 = vmatpush1.msra.mxu0 0.0
      %764 = vmatprep.subr.mxu0 0.0
      %765 = vmatpush1.msra.mxu0 0.0
      %766 = vmatprep.subr.mxu0 0.0
      %767 = vmatpush1.msra.mxu0 0.0
      %768 = vmatprep.subr.mxu0 0.0
      %769 = vmatpush1.msra.mxu0 0.0
      %770 = vmatprep.subr.mxu0 0.0
      %771 = vmatpush1.msra.mxu0 0.0
      %772 = vmatprep.subr.mxu0 0.0
      %773 = vmatpush1.msra.mxu0 0.0
      %774 = vmatprep.subr.mxu0 0.0
      %775 = vmatpush1.msra.mxu0 0.0
      %776 = vmatprep.subr.mxu0 0.0
      %777 = vmatpush1.msra.mxu0 0.0
      %778 = vmatprep.subr.mxu0 0.0
      %779 = vmatpush1.msra.mxu0 0.0
      %780 = vmatprep.subr.mxu0 0.0
      %781 = vmatpush1.msra.mxu0 0.0
      %782 = vmatprep.subr.mxu0 0.0
      %783 = vmatpush1.msra.mxu0 0.0
      %784 = vmatprep.subr.mxu0 0.0
      %785 = vmatpush1.msra.mxu0 0.0
      %786 = vmatprep.subr.mxu0 0.0
      %787 = vmatpush1.msra.mxu0 0.0
      %788 = vmatprep.subr.mxu0 0.0
      %789 = vmatpush1.msra.mxu0 0.0
      %790 = vmatprep.subr.mxu0 0.0
      %791 = vmatpush1.msra.mxu0 0.0
      %792 = vmatprep.subr.mxu0 0.0
      %793 = vmatpush1.msra.mxu0 0.0
      %794 = vmatprep.subr.mxu0 0.0
      %795 = vmatpush1.msra.mxu0 0.0
      %796 = vmatprep.subr.mxu0 0.0
      %797 = vmatpush1.msra.mxu0 0.0
      %798 = vmatprep.subr.mxu0 0.0
      %799 = vmatpush1.msra.mxu0 0.0
      %800 = vmatprep.subr.mxu0 0.0
      %801 = vmatpush1.msra.mxu0 0.0
      %802 = vmatprep.subr.mxu0 0.0
      %803 = vmatpush1.msra.mxu0 0.0
      %804 = vmatprep.subr.mxu0 0.0
      %805 = vmatpush1.msra.mxu0 0.0
      %806 = vmatprep.subr.mxu0 0.0
      %807 = vmatpush1.msra.mxu0 0.0
      %808 = vmatprep.subr.mxu0 0.0
      %809 = vmatpush1.msra.mxu0 0.0
      %810 = vmatprep.subr.mxu0 0.0
      %811 = vmatpush1.msra.mxu0 0.0
      %812 = vmatprep.subr.mxu0 0.0
      %813 = vmatpush1.msra.mxu0 0.0
      %814 = vmatprep.subr.mxu0 0.0
      %815 = vmatpush1.msra.mxu0 0.0
      %816 = vmatprep.subr.mxu0 0.0
      %817 = vmatpush1.msra.mxu0 0.0
      %818 = vmatprep.subr.mxu0 0.0
      %819 = vmatpush1.msra.mxu0 0.0
      %820 = vmatprep.mubr.f32.mxu0 0.0
      %821 = vmatmul.mubr.f32.gmra.mrb[0].mxu0 %v754
      %v822 = vpop.f32.mrb[0].mxu0
      %v823 = vadd.f32 %v750, %v822
      %v824 = vpop.f32.mrb[0].mxu0
      %825 = vdwg.mxu0
      %v826 = vxor.u32 %v823, 2147483648
      %v827 = vmul.f32 %v826, 1.442695
      %v828 = vpow.pop %v827
      %v829 = vadd.f32 %v828, 1.0
      %v830 = vrcp.pop %v829
      %v831 = vmul.f32 1.0, %v830
      %v832 = vlaneseq
      %v833 = vshrl.u32 %v832, 7
      %v834 = vsub.s32 0, %v833
      %v835 = vrot.slane %v831, %v834
      %837 = vbcast.lane.b32.xlu0 %v835, 256
      %v838 = vpop.permute.xlu0 %837
      %s840 = sor.u32 256, 8
      %841 = vbcast.lane.b32.xlu0 %v835, %s840
      %v842 = vpop.permute.xlu0 %841
      %s844 = sor.u32 256, 16
      %845 = vbcast.lane.b32.xlu0 %v835, %s844
      %v846 = vpop.permute.xlu0 %845
      %s848 = sor.u32 256, 24
      %849 = vbcast.lane.b32.xlu0 %v835, %s848
      %v850 = vpop.permute.xlu0 %849
      %s852 = sor.u32 256, 32
      %853 = vbcast.lane.b32.xlu0 %v835, %s852
      %v854 = vpop.permute.xlu0 %853
      %s856 = sor.u32 256, 40
      %857 = vbcast.lane.b32.xlu0 %v835, %s856
      %v858 = vpop.permute.xlu0 %857
      %s860 = sor.u32 256, 48
      %861 = vbcast.lane.b32.xlu0 %v835, %s860
      %v862 = vpop.permute.xlu0 %861
      %s864 = sor.u32 256, 56
      %865 = vbcast.lane.b32.xlu0 %v835, %s864
      %v866 = vpop.permute.xlu0 %865
      %s868 = sor.u32 256, 64
      %869 = vbcast.lane.b32.xlu0 %v835, %s868
      %v870 = vpop.permute.xlu0 %869
      %s872 = sor.u32 256, 72
      %873 = vbcast.lane.b32.xlu0 %v835, %s872
      %v874 = vpop.permute.xlu0 %873
      %s876 = sor.u32 256, 80
      %877 = vbcast.lane.b32.xlu0 %v835, %s876
      %v878 = vpop.permute.xlu0 %877
      %s880 = sor.u32 256, 88
      %881 = vbcast.lane.b32.xlu0 %v835, %s880
      %v882 = vpop.permute.xlu0 %881
      %s884 = sor.u32 256, 96
      %885 = vbcast.lane.b32.xlu0 %v835, %s884
      %v886 = vpop.permute.xlu0 %885
      %s888 = sor.u32 256, 104
      %889 = vbcast.lane.b32.xlu0 %v835, %s888
      %v890 = vpop.permute.xlu0 %889
      %s892 = sor.u32 256, 112
      %893 = vbcast.lane.b32.xlu0 %v835, %s892
      %v894 = vpop.permute.xlu0 %893
      %s896 = sor.u32 256, 120
      %897 = vbcast.lane.b32.xlu0 %v835, %s896
      %v898 = vpop.permute.xlu0 %897
      %v899 = vlaneseq
      %v900 = vshrl.u32 %v899, 7
      %v901 = vsub.s32 1, %v900
      %v902 = vrot.slane %v831, %v901
      %904 = vbcast.lane.b32.xlu0 %v902, 256
      %v905 = vpop.permute.xlu0 %904
      %s907 = sor.u32 256, 8
      %908 = vbcast.lane.b32.xlu0 %v902, %s907
      %v909 = vpop.permute.xlu0 %908
      %s911 = sor.u32 256, 16
      %912 = vbcast.lane.b32.xlu0 %v902, %s911
      %v913 = vpop.permute.xlu0 %912
      %s915 = sor.u32 256, 24
      %916 = vbcast.lane.b32.xlu0 %v902, %s915
      %v917 = vpop.permute.xlu0 %916
      %s919 = sor.u32 256, 32
      %920 = vbcast.lane.b32.xlu0 %v902, %s919
      %v921 = vpop.permute.xlu0 %920
      %s923 = sor.u32 256, 40
      %924 = vbcast.lane.b32.xlu0 %v902, %s923
      %v925 = vpop.permute.xlu0 %924
      %s927 = sor.u32 256, 48
      %928 = vbcast.lane.b32.xlu0 %v902, %s927
      %v929 = vpop.permute.xlu0 %928
      %s931 = sor.u32 256, 56
      %932 = vbcast.lane.b32.xlu0 %v902, %s931
      %v933 = vpop.permute.xlu0 %932
      %s935 = sor.u32 256, 64
      %936 = vbcast.lane.b32.xlu0 %v902, %s935
      %v937 = vpop.permute.xlu0 %936
      %s939 = sor.u32 256, 72
      %940 = vbcast.lane.b32.xlu0 %v902, %s939
      %v941 = vpop.permute.xlu0 %940
      %s943 = sor.u32 256, 80
      %944 = vbcast.lane.b32.xlu0 %v902, %s943
      %v945 = vpop.permute.xlu0 %944
      %s947 = sor.u32 256, 88
      %948 = vbcast.lane.b32.xlu0 %v902, %s947
      %v949 = vpop.permute.xlu0 %948
      %s951 = sor.u32 256, 96
      %952 = vbcast.lane.b32.xlu0 %v902, %s951
      %v953 = vpop.permute.xlu0 %952
      %s955 = sor.u32 256, 104
      %956 = vbcast.lane.b32.xlu0 %v902, %s955
      %v957 = vpop.permute.xlu0 %956
      %s959 = sor.u32 256, 112
      %960 = vbcast.lane.b32.xlu0 %v902, %s959
      %v961 = vpop.permute.xlu0 %960
      %s963 = sor.u32 256, 120
      %964 = vbcast.lane.b32.xlu0 %v902, %s963
      %v965 = vpop.permute.xlu0 %964
      %v966 = vmul.f32 %v233, %v838
      %v967 = vmul.f32 %v234, %v838
      %v968 = vmul.f32 %v235, %v842
      %v969 = vmul.f32 %v236, %v842
      %v970 = vmul.f32 %v237, %v846
      %v971 = vmul.f32 %v238, %v846
      %v972 = vmul.f32 %v239, %v850
      %v973 = vmul.f32 %v240, %v850
      %v974 = vmul.f32 %v241, %v854
      %v975 = vmul.f32 %v242, %v854
      %v976 = vmul.f32 %v243, %v858
      %v977 = vmul.f32 %v244, %v858
      %v978 = vmul.f32 %v245, %v862
      %v979 = vmul.f32 %v246, %v862
      %v980 = vmul.f32 %v247, %v866
      %v981 = vmul.f32 %v248, %v866
      %v982 = vmul.f32 %v249, %v870
      %v983 = vmul.f32 %v250, %v870
      %v984 = vmul.f32 %v251, %v874
      %v985 = vmul.f32 %v252, %v874
      %v986 = vmul.f32 %v253, %v878
      %v987 = vmul.f32 %v254, %v878
      %v988 = vmul.f32 %v255, %v882
      %v989 = vmul.f32 %v256, %v882
      %v990 = vmul.f32 %v257, %v886
      %v991 = vmul.f32 %v258, %v886
      %v992 = vmul.f32 %v259, %v890
      %v993 = vmul.f32 %v260, %v890
      %v994 = vmul.f32 %v261, %v894
      %v995 = vmul.f32 %v262, %v894
      %v996 = vmul.f32 %v263, %v898
      %v997 = vmul.f32 %v264, %v898
      %v998 = vmul.f32 %v265, %v905
      %v999 = vmul.f32 %v266, %v905
      %v1000 = vmul.f32 %v267, %v909
      %v1001 = vmul.f32 %v268, %v909
      %v1002 = vmul.f32 %v269, %v913
      %v1003 = vmul.f32 %v270, %v913
      %v1004 = vmul.f32 %v271, %v917
      %v1005 = vmul.f32 %v272, %v917
      %v1006 = vmul.f32 %v273, %v921
      %v1007 = vmul.f32 %v274, %v921
      %v1008 = vmul.f32 %v275, %v925
      %v1009 = vmul.f32 %v276, %v925
      %v1010 = vmul.f32 %v277, %v929
      %v1011 = vmul.f32 %v278, %v929
      %v1012 = vmul.f32 %v279, %v933
      %v1013 = vmul.f32 %v280, %v933
      %v1014 = vmul.f32 %v281, %v937
      %v1015 = vmul.f32 %v282, %v937
      %v1016 = vmul.f32 %v283, %v941
      %v1017 = vmul.f32 %v284, %v941
      %v1018 = vmul.f32 %v285, %v945
      %v1019 = vmul.f32 %v286, %v945
      %v1020 = vmul.f32 %v287, %v949
      %v1021 = vmul.f32 %v288, %v949
      %v1022 = vmul.f32 %v289, %v953
      %v1023 = vmul.f32 %v290, %v953
      %v1024 = vmul.f32 %v291, %v957
      %v1025 = vmul.f32 %v292, %v957
      %v1026 = vmul.f32 %v293, %v961
      %v1027 = vmul.f32 %v294, %v961
      %v1028 = vmul.f32 %v295, %v965
      %v1029 = vmul.f32 %v296, %v965
      %1030 = vst [vmem:[%s231] sm:$0xff] %v966
      %1031 = vst [vmem:[%s231 + $0x8] sm:$0xff] %v967
      %1032 = vst [vmem:[%s231 + $0x10] sm:$0xff] %v968
      %1033 = vst [vmem:[%s231 + $0x18] sm:$0xff] %v969
      %1034 = vst [vmem:[%s231 + $0x20] sm:$0xff] %v970
      %1035 = vst [vmem:[%s231 + $0x28] sm:$0xff] %v971
      %1036 = vst [vmem:[%s231 + $0x30] sm:$0xff] %v972
      %1037 = vst [vmem:[%s231 + $0x38] sm:$0xff] %v973
      %1038 = vst [vmem:[%s231 + $0x40] sm:$0xff] %v974
      %1039 = vst [vmem:[%s231 + $0x48] sm:$0xff] %v975
      %1040 = vst [vmem:[%s231 + $0x50] sm:$0xff] %v976
      %1041 = vst [vmem:[%s231 + $0x58] sm:$0xff] %v977
      %1042 = vst [vmem:[%s231 + $0x60] sm:$0xff] %v978
      %1043 = vst [vmem:[%s231 + $0x68] sm:$0xff] %v979
      %1044 = vst [vmem:[%s231 + $0x70] sm:$0xff] %v980
      %1045 = vst [vmem:[%s231 + $0x78] sm:$0xff] %v981
      %1046 = vst [vmem:[%s231 + $0x80] sm:$0xff] %v982
      %1047 = vst [vmem:[%s231 + $0x88] sm:$0xff] %v983
      %1048 = vst [vmem:[%s231 + $0x90] sm:$0xff] %v984
      %1049 = vst [vmem:[%s231 + $0x98] sm:$0xff] %v985
      %1050 = vst [vmem:[%s231 + $0xa0] sm:$0xff] %v986
      %1051 = vst [vmem:[%s231 + $0xa8] sm:$0xff] %v987
      %1052 = vst [vmem:[%s231 + $0xb0] sm:$0xff] %v988
      %1053 = vst [vmem:[%s231 + $0xb8] sm:$0xff] %v989
      %1054 = vst [vmem:[%s231 + $0xc0] sm:$0xff] %v990
      %1055 = vst [vmem:[%s231 + $0xc8] sm:$0xff] %v991
      %1056 = vst [vmem:[%s231 + $0xd0] sm:$0xff] %v992
      %1057 = vst [vmem:[%s231 + $0xd8] sm:$0xff] %v993
      %1058 = vst [vmem:[%s231 + $0xe0] sm:$0xff] %v994
      %1059 = vst [vmem:[%s231 + $0xe8] sm:$0xff] %v995
      %1060 = vst [vmem:[%s231 + $0xf0] sm:$0xff] %v996
      %1061 = vst [vmem:[%s231 + $0xf8] sm:$0xff] %v997
      %1062 = vst [vmem:[%s231 + $0x100] sm:$0xff] %v998
      %1063 = vst [vmem:[%s231 + $0x108] sm:$0xff] %v999
      %1064 = vst [vmem:[%s231 + $0x110] sm:$0xff] %v1000
      %1065 = vst [vmem:[%s231 + $0x118] sm:$0xff] %v1001
      %1066 = vst [vmem:[%s231 + $0x120] sm:$0xff] %v1002
      %1067 = vst [vmem:[%s231 + $0x128] sm:$0xff] %v1003
      %1068 = vst [vmem:[%s231 + $0x130] sm:$0xff] %v1004
      %1069 = vst [vmem:[%s231 + $0x138] sm:$0xff] %v1005
      %1070 = vst [vmem:[%s231 + $0x140] sm:$0xff] %v1006
      %1071 = vst [vmem:[%s231 + $0x148] sm:$0xff] %v1007
      %1072 = vst [vmem:[%s231 + $0x150] sm:$0xff] %v1008
      %1073 = vst [vmem:[%s231 + $0x158] sm:$0xff] %v1009
      %1074 = vst [vmem:[%s231 + $0x160] sm:$0xff] %v1010
      %1075 = vst [vmem:[%s231 + $0x168] sm:$0xff] %v1011
      %1076 = vst [vmem:[%s231 + $0x170] sm:$0xff] %v1012
      %1077 = vst [vmem:[%s231 + $0x178] sm:$0xff] %v1013
      %1078 = vst [vmem:[%s231 + $0x180] sm:$0xff] %v1014
      %1079 = vst [vmem:[%s231 + $0x188] sm:$0xff] %v1015
      %1080 = vst [vmem:[%s231 + $0x190] sm:$0xff] %v1016
      %1081 = vst [vmem:[%s231 + $0x198] sm:$0xff] %v1017
      %1082 = vst [vmem:[%s231 + $0x1a0] sm:$0xff] %v1018
      %1083 = vst [vmem:[%s231 + $0x1a8] sm:$0xff] %v1019
      %1084 = vst [vmem:[%s231 + $0x1b0] sm:$0xff] %v1020
      %1085 = vst [vmem:[%s231 + $0x1b8] sm:$0xff] %v1021
      %1086 = vst [vmem:[%s231 + $0x1c0] sm:$0xff] %v1022
      %1087 = vst [vmem:[%s231 + $0x1c8] sm:$0xff] %v1023
      %1088 = vst [vmem:[%s231 + $0x1d0] sm:$0xff] %v1024
      %1089 = vst [vmem:[%s231 + $0x1d8] sm:$0xff] %v1025
      %1090 = vst [vmem:[%s231 + $0x1e0] sm:$0xff] %v1026
      %1091 = vst [vmem:[%s231 + $0x1e8] sm:$0xff] %v1027
      %1092 = vst [vmem:[%s231 + $0x1f0] sm:$0xff] %v1028
      %1093 = vst [vmem:[%s231 + $0x1f8] sm:$0xff] %v1029
      %s1094 = smul.u32 2, %s16
      %p1095 = scmp.lt.s32.totalorder %s1094, 7
      %s1096 = scalar_select %p1095, %s1094, 7
      %s1097 = smul.addr %s1096, 32
      %s1098 = smul.addr %s1097, 8
      %s1099 = scalar_lea.vmem %s5, %s1098
      // Predicated region
      $region41: #{se_block.1} parent=39 // pred_check
        %p1100 = pneg %p144
      $region42: #{se_block.1} parent=39 // pred_check_branch
        %1102 = sbr.rel (%p1100) target = $region44
      $region43: #{se_block.1} parent=39 // pred_region
        %s1103 = smul.u32 2, %s16
      $region44: #{se_block.1} parent=39 // pred_fallthru
        _
    $region40: #{se_block.1} parent=5 // pred_fallthru
      _
    %p1104 = scmp.le.s32.totalorder 2, %s11
    // Predicated region
    $region45: #{se_block.1} parent=5 // pred_check
      %p1105 = pneg %p1104
    $region46: #{se_block.1} parent=5 // pred_check_branch
      %1107 = sbr.rel (%p1105) target = $region48
    $region47: #{se_block.1} parent=5 // pred_region
      %s1108 = ssub.s32 %s11, 2
      // Predicated region
      $region49: #{se_block.1} parent=47 // pred_check
        %p1109 = pneg %p150
      $region50: #{se_block.1} parent=47 // pred_check_branch
        %1111 = sbr.rel (%p1109) target = $region52
      $region51: #{se_block.1} parent=47 // pred_region
        %s1112 = smul.u32 2, %s17
        %p1113 = scmp.lt.s32.totalorder %s1112, 7
        %s1114 = scalar_select %p1113, %s1112, 7
        %s1115 = smul.addr %s1114, 32
        %s1116 = smul.addr %s1115, 8
        %s1117 = scalar_lea.vmem %s5, %s1116
      $region52: #{se_block.1} parent=47 // pred_fallthru
        _
    $region48: #{se_block.1} parent=5 // pred_fallthru
      _
  $region6: #{se_block.1} parent=0 // loop_footer
    %s15 = sadd.s32 1, %s11
  $region7: #{se_block.1} parent=0 // loop_footer_branch
    %10 = sbr.rel target = $region3
  $region8: #{se_block.1} parent=0 // loop_exit
    _

</llo_original>
